<compile_context>
chip_gen: v7x
topology: tpu7x:2x2x1
jax: 0.10.0
libtpu: 0.0.40
codegen_flags: <defaults>
</compile_context>

<pallas_src>
import jax
import jax.numpy as jnp
from jax.experimental import pallas as pl
from jax.experimental.pallas import tpu as pltpu


def _attn_kernel(x_ref, w_ref, b_ref, o_ref):
    # x_ref: (TB, C, HW)  input dtype
    # w_ref: (1, C, 1)    conv1x1 weight (out_channels = 1), f32
    # b_ref: (1,)         conv1x1 bias, f32, in SMEM
    # o_ref: (TB, C, HW)
    #
    # 1x1 conv == per-pixel channel reduction.  Done on the VPU (multiply) + XLU
    # (sublane reduce) in f32; an M=1, K=C matmul would leave the MXU ~idle while
    # exposing per-batch push/pop latency.
    logits = jnp.sum(x_ref[...] * w_ref[...], axis=1, keepdims=True) + b_ref[0]  # (TB,1,HW) f32

    # Numerically-stable softmax over the flattened spatial axis (PyTorch softmax dim=2).
    m = jnp.max(logits, axis=-1, keepdims=True)
    e = jnp.exp(logits - m)
    s = jnp.sum(e, axis=-1, keepdims=True)
    attn = e * pl.reciprocal(s, approx=False)        # exact: keeps the 1e-5 tolerance

    # Re-read x_ref here (no multi-MiB value held live across the reductions) and
    # broadcast attention over channels (sublane broadcast) in the native dtype.
    o_ref[...] = (x_ref[...] * attn.astype(x_ref.dtype)).astype(o_ref.dtype)


def _round_up(x, m):
    return (x + m - 1) // m * m


def _vmem_capacity_bytes():
    try:
        return int(pltpu.get_tpu_info().vmem_capacity_bytes)
    except Exception:
        return 64 * 1024 * 1024          # conservative fallback (v7x per-TensorCore VMEM)


def simplified_attention(x_nchw, weight, bias):
    """x_nchw: (B, C, H, W); weight: (1, C, 1, 1); bias: (1,). nn.Conv2d(C,1,1)+softmax(dim=2)."""
    B, C, H, W = x_nchw.shape
    HW = H * W
    x = x_nchw.reshape(B, C, HW)         # free reshape; no pads/slices -> 1 HBM read + 1 write
    itemsize = x.dtype.itemsize

    # ---- per-generation VMEM budget (v5e/v6e: 128 MiB physical, v7x: 64 MiB) ----
    vmem_cap = _vmem_capacity_bytes()
    vmem_limit = min(vmem_cap * 3 // 4, 100 * 1024 * 1024)   # ~48 MiB on v7x, ~96 MiB on v5e/v6e
    block_budget = int(vmem_limit * 0.85)                    # headroom for internal scratch

    # ---- batch tiling: largest TB whose *padded* working set fits the budget ----
    # VMEM buffers pad the trailing (C, HW) dims to the (sublane, 128) tile, so account
    # for round_up(C, 8 or 16) and round_up(HW, 128), not the dense bytes.
    sublane = 8 * 4 // itemsize                                        # 8 for f32, 16 for bf16
    padded_b = _round_up(C, sublane) * _round_up(HW, 128) * itemsize   # per batch element in VMEM
    f32_tmp_b = _round_up(C, 8) * _round_up(HW, 128) * 4               # conv product / logits temp
    per_tb = 4 * padded_b + f32_tmp_b            # double-buffered in + out (+ f32 temp)
    TB = max(1, min(B, block_budget // max(per_tb, 1)))

    # Split for v7x's second TensorCore only when the whole batch would otherwise be one
    # grid step and the split keeps blocks large; on single-TC v5e/v6e the extra grid
    # step costs ~0.35us, negligible at these block sizes.
    if TB >= B and B >= 2 and padded_b * pl.cdiv(B, 2) >= 512 * 1024:
        TB = pl.cdiv(B, 2)

    grid_b = pl.cdiv(B, TB)                      # partial last block handled by Pallas masking

    w = weight.reshape(1, C, 1).astype(jnp.float32)
    b = bias.reshape(1).astype(jnp.float32)

    out = pl.pallas_call(
        _attn_kernel,
        out_shape=jax.ShapeDtypeStruct((B, C, HW), x.dtype),
        grid_spec=pltpu.PrefetchScalarGridSpec(
            num_scalar_prefetch=0,
            grid=(grid_b,),
            in_specs=[
                pl.BlockSpec((TB, C, HW), lambda i: (i, 0, 0)),     # full (C, HW) extent per block
                pl.BlockSpec((1, C, 1), lambda i: (0, 0, 0)),       # tiny resident weight tile
                pl.BlockSpec(memory_space=pltpu.MemorySpace.SMEM),  # scalar bias
            ],
            out_specs=pl.BlockSpec((TB, C, HW), lambda i: (i, 0, 0)),
        ),
        compiler_params=pltpu.CompilerParams(
            dimension_semantics=("parallel",),
            vmem_limit_bytes=vmem_limit,
        ),
    )(x, w, b)

    return out.reshape(B, C, H, W)


def _reference(x_nchw, weight, bias):
    B, C, H, W = x_nchw.shape
    w = weight.reshape(1, C, 1, 1)
    logits = jnp.sum(x_nchw * w, axis=1, keepdims=True) + bias.reshape(1, 1, 1, 1)
    logits = logits.reshape(B, 1, H * W)
    attn = jax.nn.softmax(logits, axis=2).reshape(B, 1, H, W)
    return x_nchw * attn


if __name__ == "__main__":
    key = jax.random.PRNGKey(0)
    kx, kw, kb = jax.random.split(key, 3)

    # primary test (matches the module's implied shapes)
    B, C, H, W = 2, 4, 16, 16
    x = jax.random.normal(kx, (B, C, H, W), dtype=jnp.float32)
    weight = jax.random.normal(kw, (1, C, 1, 1), dtype=jnp.float32) * 0.1
    bias = jax.random.normal(kb, (1,), dtype=jnp.float32) * 0.1

    out = jax.block_until_ready(simplified_attention(x, weight, bias))
    ref = _reference(x, weight, bias)
    assert out.shape == (B, C, H, W)
    assert jnp.allclose(out, ref, atol=1e-5, rtol=1e-5)

    # secondary test: HW not a multiple of 128 -> full-extent ragged block, masked tail store
    B2, C2, H2, W2 = 3, 4, 10, 10
    x2 = jax.random.normal(kx, (B2, C2, H2, W2), dtype=jnp.float32)
    w2 = jax.random.normal(kw, (1, C2, 1, 1), dtype=jnp.float32) * 0.1
    b2 = jax.random.normal(kb, (1,), dtype=jnp.float32) * 0.1
    out2 = jax.block_until_ready(simplified_attention(x2, w2, b2))
    assert jnp.allclose(out2, _reference(x2, w2, b2), atol=1e-5, rtol=1e-5)

    print("KERNEL_OK")
</pallas_src>

<mosaic_0001>
module attributes {stable_mosaic.version = 11 : i64} {
  func.func @_attn_kernel(%arg0: i32, %arg1: memref<2x4x256xf32, #tpu.memory_space<vmem>>, %arg2: memref<1x4x1xf32, #tpu.memory_space<vmem>>, %arg3: memref<1xf32, #tpu.memory_space<smem>>, %arg4: memref<2x4x256xf32, #tpu.memory_space<vmem>>) attributes {dimension_semantics = [#tpu.dimension_semantics<parallel>], iteration_bounds = array<i64: 1>, scalar_prefetch = 0 : i64, scratch_operands = 0 : i64, tpu.core_type = #tpu.core_type<tc>, window_params = [{transform_indices = @transform_0, window_bounds = array<i64: 2, 4, 256>}, {pipeline_mode = #tpu.pipeline_mode<synchronous>, transform_indices = @transform_1, window_bounds = array<i64: 1, 4, 1>}, {transform_indices = @transform_2, window_bounds = array<i64: 1>}, {transform_indices = @transform_3, window_bounds = array<i64: 2, 4, 256>}]} {
    %c0 = arith.constant 0 : index
    %c0_0 = arith.constant 0 : index
    %c0_1 = arith.constant 0 : index
    %0 = vector.load %arg1[%c0, %c0_0, %c0_1] : memref<2x4x256xf32, #tpu.memory_space<vmem>>, vector<2x4x256xf32>
    %c0_2 = arith.constant 0 : index
    %c0_3 = arith.constant 0 : index
    %c0_4 = arith.constant 0 : index
    %1 = vector.load %arg2[%c0_2, %c0_3, %c0_4] : memref<1x4x1xf32, #tpu.memory_space<vmem>>, vector<1x4x1xf32>
    %2 = vector.broadcast %1 : vector<1x4x1xf32> to vector<2x4x256xf32>
    %3 = arith.mulf %0, %2 : vector<2x4x256xf32>
    %cst = arith.constant dense<0.000000e+00> : vector<2x256xf32>
    %4 = vector.multi_reduction <add>, %3, %cst [1] : vector<2x4x256xf32> to vector<2x256xf32>
    %5 = vector.shape_cast %4 : vector<2x256xf32> to vector<2x1x256xf32>
    %c0_5 = arith.constant 0 : index
    %6 = memref.load %arg3[%c0_5] : memref<1xf32, #tpu.memory_space<smem>>
    %7 = vector.broadcast %6 : f32 to vector<2x1x256xf32>
    %8 = arith.addf %5, %7 : vector<2x1x256xf32>
    %cst_6 = arith.constant dense<0xFF800000> : vector<2x1xf32>
    %9 = vector.multi_reduction <maximumf>, %8, %cst_6 [2] : vector<2x1x256xf32> to vector<2x1xf32>
    %10 = vector.shape_cast %9 : vector<2x1xf32> to vector<2x1x1xf32>
    %11 = vector.broadcast %10 : vector<2x1x1xf32> to vector<2x1x256xf32>
    %12 = arith.subf %8, %11 : vector<2x1x256xf32>
    %13 = math.exp %12 : vector<2x1x256xf32>
    %cst_7 = arith.constant dense<0.000000e+00> : vector<2x1xf32>
    %14 = vector.multi_reduction <add>, %13, %cst_7 [2] : vector<2x1x256xf32> to vector<2x1xf32>
    %15 = vector.shape_cast %14 : vector<2x1xf32> to vector<2x1x1xf32>
    %16 = tpu.reciprocal %15 : vector<2x1x1xf32> -> vector<2x1x1xf32>
    %17 = vector.broadcast %16 : vector<2x1x1xf32> to vector<2x1x256xf32>
    %18 = arith.mulf %13, %17 : vector<2x1x256xf32>
    %c0_8 = arith.constant 0 : index
    %c0_9 = arith.constant 0 : index
    %c0_10 = arith.constant 0 : index
    %19 = vector.load %arg1[%c0_8, %c0_9, %c0_10] : memref<2x4x256xf32, #tpu.memory_space<vmem>>, vector<2x4x256xf32>
    %20 = vector.broadcast %18 : vector<2x1x256xf32> to vector<2x4x256xf32>
    %21 = arith.mulf %19, %20 : vector<2x4x256xf32>
    %c0_11 = arith.constant 0 : index
    %c0_12 = arith.constant 0 : index
    %c0_13 = arith.constant 0 : index
    %22 = vector.load %arg4[%c0_11, %c0_12, %c0_13] : memref<2x4x256xf32, #tpu.memory_space<vmem>>, vector<2x4x256xf32>
    tpu.vector_store %arg4[%c0_11, %c0_12, %c0_13], %21 {strides = array<i32>} : memref<2x4x256xf32, #tpu.memory_space<vmem>>, vector<2x4x256xf32>,
    return
  }
  func.func @transform_0(%arg0: i32) -> (i32, i32, i32) {
    %c0_i32 = arith.constant 0 : i32
    %c0_i32_0 = arith.constant 0 : i32
    %c0_i32_1 = arith.constant 0 : i32
    return %arg0, %c0_i32, %c0_i32_0 : i32, i32, i32
  }
  func.func @transform_1(%arg0: i32) -> (i32, i32, i32) {
    %c0_i32 = arith.constant 0 : i32
    %c0_i32_0 = arith.constant 0 : i32
    %c0_i32_1 = arith.constant 0 : i32
    %c0_i32_2 = arith.constant 0 : i32
    return %c0_i32, %c0_i32_0, %c0_i32_1 : i32, i32, i32
  }
  func.func @transform_2(%arg0: i32) -> i32 {
    %c0_i32 = arith.constant 0 : i32
    %c0_i32_0 = arith.constant 0 : i32
    return %c0_i32 : i32
  }
  func.func @transform_3(%arg0: i32) -> (i32, i32, i32) {
    %c0_i32 = arith.constant 0 : i32
    %c0_i32_0 = arith.constant 0 : i32
    %c0_i32_1 = arith.constant 0 : i32
    return %arg0, %c0_i32, %c0_i32_0 : i32, i32, i32
  }
}

</mosaic_0001>

<llo_original>
// kernel: tpu_custom_call.1
$region0: #{tpu_custom_call.1}
  #allocation0 [shape = 'u32[]', space=smem, size = 0x4, offset = 0x4, fixed_abs, tag = 'smem constant byte address 0x4 - core index']
  #allocation1 [shape = 'u32[144,128]{1,0:T(1,128)}', space=vmem, size = 0x12000, scoped, tag = 'internal scratch']
  #allocation2 [shape = 'f32[1]{0:T(128)S(6)}', space=smem, size = 0x200, scoped, tag = 'scoped memory for tpu_custom_call.1']
  %s0 = inlined_call_operand.hbm [shape: f32[2,4,256], index: 0, kind: input, shape index: {}]
  %s1 = inlined_call_operand.vmem [shape: f32[1,4,1], index: 1, kind: input, shape index: {}]
  %s2 = inlined_call_operand.<no memory space> [shape: f32[1], index: 2, kind: input, shape index: {}]
  %s3 = inlined_call_operand.hbm [shape: f32[2,4,256], index: 3, kind: output, shape index: {}]
  %s4 = sld [smem:[#allocation0]]
  $region26: #{tpu_custom_call.1} parent=0
    _
  %s6 = ssub.s32 1, %s4
  %s7 = scalar_select 0, %s6, %s4
  %8 = sst [smem:[#allocation2]] %s2
  $region1: #{tpu_custom_call.1} parent=0
    #allocation3 [shape = 'u8[8192]{0}', space=vmem, size = 0x2000, scoped, tag = 'input window, operand 0, single buffered']
    #allocation4 [shape = 's32[1]{0}', space=sflag, size = 0x4, scoped, tag = 'scoped memory for tpu_custom_call.1']
    #allocation5 [shape = 's32[1]{0}', space=sflag, size = 0x4, scoped, tag = 'scoped memory for tpu_custom_call.1']
    #allocation6 [shape = 'u8[8192]{0}', space=vmem, size = 0x2000, scoped, tag = 'output window, operand 0, single buffered']
    %9 = vsyncpa [#allocation4], 0
    %10 = vsyncpa [#allocation5], 0
    // Predicated region
    $region2: #{tpu_custom_call.1} parent=1 // pred_check
      _
    $region3: #{tpu_custom_call.1} parent=1 // pred_check_branch
      %12 = sbr.rel (0) target = $region5
    $region4: #{tpu_custom_call.1} parent=1 // pred_region
      %s14 = ssub.s32 256, 256
      %15 = vsyncadd [#allocation4], %s14
      %s16 = sshll.u32 [#allocation3], 4
      %s17 = int_to_ptr.vmem [resolvable:$true] %s16
      %22 = dma.hbm_to_vmem [thread:$0]  %s0, 256, %s17, [#allocation4], 128, 128, 8
    $region5: #{tpu_custom_call.1} parent=1 // pred_fallthru
      _
    // Predicated region
    $region6: #{tpu_custom_call.1} parent=1 // pred_check
      _
    $region7: #{tpu_custom_call.1} parent=1 // pred_check_branch
      %24 = sbr.rel (0) target = $region9
    $region8: #{tpu_custom_call.1} parent=1 // pred_region
      _
    $region9: #{tpu_custom_call.1} parent=1 // pred_fallthru
      _
    // Predicated region
    $region10: #{tpu_custom_call.1} parent=1 // pred_check
      _
    $region11: #{tpu_custom_call.1} parent=1 // pred_check_branch
      %26 = sbr.rel (0) target = $region13
    $region12: #{tpu_custom_call.1} parent=1 // pred_region
      _
    $region13: #{tpu_custom_call.1} parent=1 // pred_fallthru
      _
    // Predicated region
    $region14: #{tpu_custom_call.1} parent=1 // pred_check
      _
    $region15: #{tpu_custom_call.1} parent=1 // pred_check_branch
      %28 = sbr.rel (0) target = $region17
    $region16: #{tpu_custom_call.1} parent=1 // pred_region
      %29 = dma.done [#allocation4], 256
    $region17: #{tpu_custom_call.1} parent=1 // pred_fallthru
      _
    %v30 = vld [vmem:[#allocation3] sm:$0xff]
    %v31 = vld [vmem:[#allocation3 + $0x8] sm:$0xff]
    %v32 = vld [vmem:[%s1] sm:$0xf]
    %34 = vset.pattern.permute.xlu0 0
    %35 = vperm.xlu0 %34, %v32
    %v36 = vpop.permute.xlu0 %35
    %v38 = vunpack.c.l.s4 839922192
    %v39 = vunpack.c.0.s8 %v38
    %v40 = vlaneseq
    %v41 = vshrl.u32 %v40, 7
    %v42 = vsub.s32 %v39, %v41
    %v43 = vrot.slane %v36, %v42
    %v45 = vmul.f32 %v30, %v43
    %v46 = vmul.f32 %v31, %v43
    %v49 = vcombine.high %v45, %v45
    %v50 = vcombine.high %v46, %v46
    %vm53 = vcmask 1043456
    %v54 = vsel %vm53, %v45, 0.0
    %v55 = vrot.slane %v54, 4
    %v56 = vadd.f32 %v54, %v55
    %v57 = vrot.slane %v56, 2
    %v58 = vadd.f32 %v56, %v57
    %v59 = vrot.slane %v58, 1
    %v60 = vadd.f32 %v58, %v59
    %v61 = vsel %vm53, %v49, 0.0
    %v62 = vrot.slane %v61, 4
    %v63 = vadd.f32 %v61, %v62
    %v64 = vrot.slane %v63, 2
    %v65 = vadd.f32 %v63, %v64
    %v66 = vrot.slane %v65, 1
    %v67 = vadd.f32 %v65, %v66
    %v68 = vsel %vm53, %v46, 0.0
    %v69 = vrot.slane %v68, 4
    %v70 = vadd.f32 %v68, %v69
    %v71 = vrot.slane %v70, 2
    %v72 = vadd.f32 %v70, %v71
    %v73 = vrot.slane %v72, 1
    %v74 = vadd.f32 %v72, %v73
    %v75 = vsel %vm53, %v50, 0.0
    %v76 = vrot.slane %v75, 4
    %v77 = vadd.f32 %v75, %v76
    %v78 = vrot.slane %v77, 2
    %v79 = vadd.f32 %v77, %v78
    %v80 = vrot.slane %v79, 1
    %v81 = vadd.f32 %v79, %v80
    %s82 = sld [smem:[#allocation2]]
    %v83 = vstv %s82
    %v84 = vadd.f32 %v60, %v83
    %v85 = vadd.f32 %v67, %v83
    %v86 = vadd.f32 %v74, %v83
    %v87 = vadd.f32 %v81, %v83
    %v88 = vmax.f32 %v84, %v85
    %89 = vmax.xlane.f32.xlu0 %v88
    %v90 = vpop.xlane.xlu0 %89
    %v91 = vmax.f32 %v86, %v87
    %92 = vmax.xlane.f32.xlu0 %v91
    %v93 = vpop.xlane.xlu0 %92
    %v94 = vsub.f32 %v84, %v90
    %v95 = vsub.f32 %v85, %v90
    %v96 = vsub.f32 %v86, %v93
    %v97 = vsub.f32 %v87, %v93
    %v98 = vmul.f32 %v94, 1.442695
    %v99 = vpow.pop %v98
    %v100 = vmul.f32 %v95, 1.442695
    %v101 = vpow.pop %v100
    %v102 = vmul.f32 %v96, 1.442695
    %v103 = vpow.pop %v102
    %v104 = vmul.f32 %v97, 1.442695
    %v105 = vpow.pop %v104
    %v106 = vadd.f32 %v99, %v101
    %107 = vadd.xlane.f32.xlu0 %v106
    %v108 = vpop.xlane.xlu0 %107
    %v109 = vadd.f32 %v103, %v105
    %110 = vadd.xlane.f32.xlu0 %v109
    %v111 = vpop.xlane.xlu0 %110
    %v112 = vrcp.pop %v108
    %v113 = vrcp.pop %v111
    %v114 = vmul.f32 %v99, %v112
    %v115 = vmul.f32 %v101, %v112
    %v116 = vmul.f32 %v103, %v113
    %v117 = vmul.f32 %v105, %v113
    %v122 = vcombine.low %v114, %v115
    %v123 = vcombine.low %v116, %v117
    %v126 = vmul.f32 %v30, %v122
    %v127 = vmul.f32 %v31, %v123
    %128 = vst [vmem:[#allocation6] sm:$0xff] %v126
    %129 = vst [vmem:[#allocation6 + $0x8] sm:$0xff] %v127
    // Predicated region
    $region18: #{tpu_custom_call.1} parent=1 // pred_check
      _
    $region19: #{tpu_custom_call.1} parent=1 // pred_check_branch
      %131 = sbr.rel (0) target = $region21
    $region20: #{tpu_custom_call.1} parent=1 // pred_region
      %s133 = ssub.s32 256, 256
      %134 = vsyncadd [#allocation5], %s133
      %s135 = sshll.u32 [#allocation6], 4
      %s136 = int_to_ptr.vmem [resolvable:$true] %s135
      %141 = dma.vmem_to_hbm [thread:$0]  %s136, 256, %s3, [#allocation5], 128, 128, 8
    $region21: #{tpu_custom_call.1} parent=1 // pred_fallthru
      _
    // Predicated region
    $region22: #{tpu_custom_call.1} parent=1 // pred_check
      _
    $region23: #{tpu_custom_call.1} parent=1 // pred_check_branch
      %143 = sbr.rel (0) target = $region25
    $region24: #{tpu_custom_call.1} parent=1 // pred_region
      %144 = dma.done [#allocation5], 256
    $region25: #{tpu_custom_call.1} parent=1 // pred_fallthru
      _
    %145 = vsyncpa [#allocation4], 1
    %146 = vsyncpa [#allocation5], 1

</llo_original>
